<compile_context>
chip_gen: v7x
topology: tpu7x:2x2x1
jax: 0.10.0
libtpu: 0.0.40
codegen_flags: <defaults>
</compile_context>

<pallas_src>
import functools

import jax
import jax.numpy as jnp
import numpy as np
from jax.experimental import pallas as pl
from jax.experimental.pallas import tpu as pltpu

LANE = 128
SUBLANE = 8


def _round_up(n, m):
    return ((n + m - 1) // m) * m


# --------------------------------------------------------------------------- #
# Kernel
# --------------------------------------------------------------------------- #
def _mlp_kernel(n_layers, final_relu, precision, x_ref, *rest):
    """Fused MLP: h = x; for each layer h = act(h @ W + b); lane-dense store."""
    out_ref = rest[-1]
    wb = rest[:-1]

    h = x_ref[...]                                    # (TB, d_in), real width, f32
    for i in range(n_layers):
        w = wb[2 * i][...]                            # (d_i, d_{i+1}); last layer lane-padded
        b = wb[2 * i + 1][...]                        # (1,  d_{i+1}) f32
        h = jnp.dot(h.astype(w.dtype), w,
                    preferred_element_type=jnp.float32,
                    precision=precision) + b
        if i < n_layers - 1 or final_relu:            # ReLU on hidden layers only
            h = jnp.maximum(h, 0.0)
        # Dropout is identity in eval-mode forward.
        # TODO(synk): training-mode dropout would need pltpu.prng_seed +
        # pltpu.stateful_bernoulli; omitted for deterministic inference.
    out_ref[...] = h.astype(out_ref.dtype)            # lane-dense (TB, 128k) store


# --------------------------------------------------------------------------- #
# One-time parameter preparation (hoisted out of the per-call hot path)
# --------------------------------------------------------------------------- #
def prepare_mlp_params(weights, biases, *, param_dtype=jnp.float32):
    """Pad/cast parameters ONCE at model init.

    Only the FINAL layer's output dim is padded to a multiple of 128 lanes so
    the kernel's output store is lane-dense; every other dim keeps its real
    width.  Weights may be cast to bf16 (MXU-native); biases stay f32 since
    they are added on the f32 accumulator.

    Returns (params_tuple, d_out_real).
    """
    n_layers = len(weights)
    d_out = int(weights[-1].shape[1])
    params = []
    for i, (w, b) in enumerate(zip(weights, biases)):
        w = jnp.asarray(w, jnp.float32)
        b = jnp.asarray(b, jnp.float32)
        if i == n_layers - 1:
            d_out_p = _round_up(d_out, LANE)
            if d_out_p != d_out:
                w = jnp.pad(w, ((0, 0), (0, d_out_p - d_out)))
                b = jnp.pad(b, ((0, d_out_p - d_out),))
        params.append(w.astype(param_dtype))
        params.append(b.reshape(1, -1).astype(jnp.float32))
    return tuple(params), d_out


# --------------------------------------------------------------------------- #
# Generation-aware batch tile
# --------------------------------------------------------------------------- #
def _default_block_b(batch):
    """v5e/v6e (single TC): collapse the grid (one 256/512-row step; fills the
    256-wide MXU, no per-step overhead).  v7x (two TCs): keep a small, even
    'parallel' grid so the batch is sharded across both cores."""
    bp8 = _round_up(max(int(batch), 1), SUBLANE)
    try:
        kind = jax.devices()[0].device_kind.lower()
    except Exception:  # pragma: no cover
        kind = ""
    if "v7" in kind and bp8 > SUBLANE:
        n_steps = max(2, 2 * pl.cdiv(bp8, 2 * 512))   # even grid, blocks <= 512 rows
        blk = _round_up(pl.cdiv(bp8, n_steps), SUBLANE)
    else:
        blk = min(bp8, 512)
    return int(blk)


# --------------------------------------------------------------------------- #
# Forward wrapper
# --------------------------------------------------------------------------- #
def mlp_forward(x, params, d_out, *, output_layer=True, block_b=None, precision=None):
    """Fused MLP forward: x -> [Linear -> ReLU -> Dropout(eval)]* -> (Linear).

    x:      (B, d_in) float32
    params: output of prepare_mlp_params (last layer lane-padded, maybe bf16)
    d_out:  real output feature count (sliced out of the lane-padded slab)
    """
    B, d_in = x.shape
    n_layers = len(params) // 2
    assert params[0].shape[0] == d_in, "input_dim mismatch with first weight"

    if block_b is None:
        block_b = _default_block_b(B)
    block_b = max(SUBLANE, _round_up(min(int(block_b), _round_up(B, SUBLANE)), SUBLANE))
    Bp = _round_up(B, block_b)
    d_out_p = params[-1].shape[-1]

    if Bp != B:
        x = jnp.pad(x, ((0, Bp - B), (0, 0)))

    # --- VMEM budget guard: every weight is VMEM-resident across the grid. ---
    param_bytes = sum(int(np.prod(p.shape)) * p.dtype.itemsize for p in params)
    io_bytes = block_b * (d_in + d_out_p) * 4
    vmem_est = 2 * (param_bytes + io_bytes)           # pipeline double-buffers
    if vmem_est > 48 * 1024 * 1024:
        # TODO(synk): for very large DeepFM towers, tile the output-feature dim
        # or pipeline layer-by-layer instead of keeping all weights resident
        # (v7x has only 64 MiB VMEM).
        raise NotImplementedError(
            f"Resident-weight MLP would need ~{vmem_est >> 20} MiB VMEM; "
            "tile the feature dimension for towers this large.")
    vmem_limit = int(min(vmem_est + (8 << 20), 64 << 20)) if vmem_est > (16 << 20) else None

    grid = (Bp // block_b,)

    # x at its real feature width (legal: last block dim == full array dim).
    # Weights/biases: constant index_map -> stay VMEM-resident, no per-step DMA.
    in_specs = [pl.BlockSpec((block_b, d_in), lambda i: (i, 0))]
    for p in params:
        in_specs.append(pl.BlockSpec(p.shape, lambda i: (0, 0)))
    out_spec = pl.BlockSpec((block_b, d_out_p), lambda i: (i, 0))

    kernel = functools.partial(_mlp_kernel, n_layers, not output_layer, precision)

    out_p = pl.pallas_call(
        kernel,
        out_shape=jax.ShapeDtypeStruct((Bp, d_out_p), jnp.float32),
        grid=grid,
        in_specs=in_specs,
        out_specs=out_spec,
        compiler_params=pltpu.CompilerParams(
            dimension_semantics=("parallel",),
            vmem_limit_bytes=vmem_limit),
    )(x, *params)

    # Wrapper-side slice of the lane-dense slab (fuses away under jit).
    return out_p[:B, :d_out]


# --------------------------------------------------------------------------- #
# Self-test
# --------------------------------------------------------------------------- #
if __name__ == "__main__":
    # Module config: MultiLayerPerceptron(input_dim=16, embed_dims=(32,16), dropout=0.2)
    input_dim = 16
    embed_dims = (32, 16)
    dropout = 0.2            # eval-mode forward: identity
    batch = 256

    key = jax.random.PRNGKey(0)
    dims = [input_dim] + list(embed_dims) + [1]       # output_layer=True
    keys = jax.random.split(key, 2 * (len(dims) - 1) + 1)

    weights, biases = [], []
    for li in range(len(dims) - 1):
        bound = 1.0 / np.sqrt(dims[li])               # PyTorch nn.Linear-style uniform init
        w = jax.random.uniform(keys[2 * li], (dims[li], dims[li + 1]),
                               minval=-bound, maxval=bound, dtype=jnp.float32)
        b = jax.random.uniform(keys[2 * li + 1], (dims[li + 1],),
                               minval=-bound, maxval=bound, dtype=jnp.float32)
        weights.append(w)
        biases.append(b)

    x = jax.random.normal(keys[-1], (batch, input_dim), dtype=jnp.float32)

    # Pure-JAX reference (eval-mode MLP)
    h = x
    for li in range(len(weights)):
        h = h @ weights[li] + biases[li]
        if li < len(weights) - 1:
            h = jnp.maximum(h, 0.0)
    ref = np.asarray(h)

    fwd = jax.jit(mlp_forward,
                  static_argnames=("d_out", "output_layer", "block_b", "precision"))

    # f32 parameter path (strict parity with the f32 reference).
    params_f32, d_out = prepare_mlp_params(weights, biases, param_dtype=jnp.float32)
    out = jax.block_until_ready(fwd(x, params_f32, d_out=d_out))
    assert out.shape == (batch, 1)
    np.testing.assert_allclose(np.asarray(out), ref, rtol=1e-5, atol=1e-5)

    # bf16 weight path (MXU-native; tolerance relaxed by design).
    params_bf16, _ = prepare_mlp_params(weights, biases, param_dtype=jnp.bfloat16)
    out_bf16 = jax.block_until_ready(fwd(x, params_bf16, d_out=d_out))
    assert out_bf16.shape == (batch, 1)
    np.testing.assert_allclose(np.asarray(out_bf16), ref, rtol=5e-2, atol=5e-2)

    print("KERNEL_OK")
</pallas_src>

<mosaic_0001>
module attributes {stable_mosaic.version = 11 : i64} {
  func.func @_mlp_kernel(%arg0: i32, %arg1: memref<256x16xf32, #tpu.memory_space<vmem>>, %arg2: memref<16x32xf32, #tpu.memory_space<vmem>>, %arg3: memref<1x32xf32, #tpu.memory_space<vmem>>, %arg4: memref<32x16xf32, #tpu.memory_space<vmem>>, %arg5: memref<1x16xf32, #tpu.memory_space<vmem>>, %arg6: memref<16x128xf32, #tpu.memory_space<vmem>>, %arg7: memref<1x128xf32, #tpu.memory_space<vmem>>, %arg8: memref<256x128xf32, #tpu.memory_space<vmem>>) attributes {dimension_semantics = [#tpu.dimension_semantics<parallel>], iteration_bounds = array<i64: 1>, scalar_prefetch = 0 : i64, scratch_operands = 0 : i64, tpu.core_type = #tpu.core_type<tc>, window_params = [{transform_indices = @transform_0, window_bounds = array<i64: 256, 16>}, {pipeline_mode = #tpu.pipeline_mode<synchronous>, transform_indices = @transform_1, window_bounds = array<i64: 16, 32>}, {pipeline_mode = #tpu.pipeline_mode<synchronous>, transform_indices = @transform_2, window_bounds = array<i64: 1, 32>}, {pipeline_mode = #tpu.pipeline_mode<synchronous>, transform_indices = @transform_3, window_bounds = array<i64: 32, 16>}, {pipeline_mode = #tpu.pipeline_mode<synchronous>, transform_indices = @transform_4, window_bounds = array<i64: 1, 16>}, {pipeline_mode = #tpu.pipeline_mode<synchronous>, transform_indices = @transform_5, window_bounds = array<i64: 16, 128>}, {pipeline_mode = #tpu.pipeline_mode<synchronous>, transform_indices = @transform_6, window_bounds = array<i64: 1, 128>}, {transform_indices = @transform_7, window_bounds = array<i64: 256, 128>}]} {
    %c0 = arith.constant 0 : index
    %c0_0 = arith.constant 0 : index
    %0 = vector.load %arg1[%c0, %c0_0] : memref<256x16xf32, #tpu.memory_space<vmem>>, vector<256x16xf32>
    %c0_1 = arith.constant 0 : index
    %c0_2 = arith.constant 0 : index
    %1 = vector.load %arg2[%c0_1, %c0_2] : memref<16x32xf32, #tpu.memory_space<vmem>>, vector<16x32xf32>
    %c0_3 = arith.constant 0 : index
    %c0_4 = arith.constant 0 : index
    %2 = vector.load %arg3[%c0_3, %c0_4] : memref<1x32xf32, #tpu.memory_space<vmem>>, vector<1x32xf32>
    %cst = arith.constant dense<0.000000e+00> : vector<256x32xf32>
    %3 = tpu.matmul %0, %1, %cst {dimension_numbers = #tpu.dot_dimension_numbers<[1], [0], [0], [1], [0, 0, 1, 1], [], []>} : vector<256x16xf32>, vector<16x32xf32>, vector<256x32xf32> -> vector<256x32xf32>
    %4 = vector.broadcast %2 : vector<1x32xf32> to vector<256x32xf32>
    %5 = arith.addf %3, %4 : vector<256x32xf32>
    %cst_5 = arith.constant 0.000000e+00 : f32
    %6 = vector.broadcast %cst_5 : f32 to vector<256x32xf32>
    %7 = arith.maximumf %5, %6 : vector<256x32xf32>
    %c0_6 = arith.constant 0 : index
    %c0_7 = arith.constant 0 : index
    %8 = vector.load %arg4[%c0_6, %c0_7] : memref<32x16xf32, #tpu.memory_space<vmem>>, vector<32x16xf32>
    %c0_8 = arith.constant 0 : index
    %c0_9 = arith.constant 0 : index
    %9 = vector.load %arg5[%c0_8, %c0_9] : memref<1x16xf32, #tpu.memory_space<vmem>>, vector<1x16xf32>
    %cst_10 = arith.constant dense<0.000000e+00> : vector<256x16xf32>
    %10 = tpu.matmul %7, %8, %cst_10 {dimension_numbers = #tpu.dot_dimension_numbers<[1], [0], [0], [1], [0, 0, 1, 1], [], []>} : vector<256x32xf32>, vector<32x16xf32>, vector<256x16xf32> -> vector<256x16xf32>
    %11 = vector.broadcast %9 : vector<1x16xf32> to vector<256x16xf32>
    %12 = arith.addf %10, %11 : vector<256x16xf32>
    %cst_11 = arith.constant 0.000000e+00 : f32
    %13 = vector.broadcast %cst_11 : f32 to vector<256x16xf32>
    %14 = arith.maximumf %12, %13 : vector<256x16xf32>
    %c0_12 = arith.constant 0 : index
    %c0_13 = arith.constant 0 : index
    %15 = vector.load %arg6[%c0_12, %c0_13] : memref<16x128xf32, #tpu.memory_space<vmem>>, vector<16x128xf32>
    %c0_14 = arith.constant 0 : index
    %c0_15 = arith.constant 0 : index
    %16 = vector.load %arg7[%c0_14, %c0_15] : memref<1x128xf32, #tpu.memory_space<vmem>>, vector<1x128xf32>
    %cst_16 = arith.constant dense<0.000000e+00> : vector<256x128xf32>
    %17 = tpu.matmul %14, %15, %cst_16 {dimension_numbers = #tpu.dot_dimension_numbers<[1], [0], [0], [1], [0, 0, 1, 1], [], []>} : vector<256x16xf32>, vector<16x128xf32>, vector<256x128xf32> -> vector<256x128xf32>
    %18 = vector.broadcast %16 : vector<1x128xf32> to vector<256x128xf32>
    %19 = arith.addf %17, %18 : vector<256x128xf32>
    %c0_17 = arith.constant 0 : index
    %c0_18 = arith.constant 0 : index
    %20 = vector.load %arg8[%c0_17, %c0_18] : memref<256x128xf32, #tpu.memory_space<vmem>>, vector<256x128xf32>
    tpu.vector_store %arg8[%c0_17, %c0_18], %19 {strides = array<i32>} : memref<256x128xf32, #tpu.memory_space<vmem>>, vector<256x128xf32>,
    return
  }
  func.func @transform_0(%arg0: i32) -> (i32, i32) {
    %c0_i32 = arith.constant 0 : i32
    %c0_i32_0 = arith.constant 0 : i32
    return %arg0, %c0_i32 : i32, i32
  }
  func.func @transform_1(%arg0: i32) -> (i32, i32) {
    %c0_i32 = arith.constant 0 : i32
    %c0_i32_0 = arith.constant 0 : i32
    %c0_i32_1 = arith.constant 0 : i32
    return %c0_i32, %c0_i32_0 : i32, i32
  }
  func.func @transform_2(%arg0: i32) -> (i32, i32) {
    %c0_i32 = arith.constant 0 : i32
    %c0_i32_0 = arith.constant 0 : i32
    %c0_i32_1 = arith.constant 0 : i32
    return %c0_i32, %c0_i32_0 : i32, i32
  }
  func.func @transform_3(%arg0: i32) -> (i32, i32) {
    %c0_i32 = arith.constant 0 : i32
    %c0_i32_0 = arith.constant 0 : i32
    %c0_i32_1 = arith.constant 0 : i32
    return %c0_i32, %c0_i32_0 : i32, i32
  }
  func.func @transform_4(%arg0: i32) -> (i32, i32) {
    %c0_i32 = arith.constant 0 : i32
    %c0_i32_0 = arith.constant 0 : i32
    %c0_i32_1 = arith.constant 0 : i32
    return %c0_i32, %c0_i32_0 : i32, i32
  }
  func.func @transform_5(%arg0: i32) -> (i32, i32) {
    %c0_i32 = arith.constant 0 : i32
    %c0_i32_0 = arith.constant 0 : i32
    %c0_i32_1 = arith.constant 0 : i32
    return %c0_i32, %c0_i32_0 : i32, i32
  }
  func.func @transform_6(%arg0: i32) -> (i32, i32) {
    %c0_i32 = arith.constant 0 : i32
    %c0_i32_0 = arith.constant 0 : i32
    %c0_i32_1 = arith.constant 0 : i32
    return %c0_i32, %c0_i32_0 : i32, i32
  }
  func.func @transform_7(%arg0: i32) -> (i32, i32) {
    %c0_i32 = arith.constant 0 : i32
    %c0_i32_0 = arith.constant 0 : i32
    return %arg0, %c0_i32 : i32, i32
  }
}

</mosaic_0001>

<llo_original>
// kernel: mlp_forward.1
$region0: #{mlp_forward.1}
  #allocation0 [shape = 'u32[]', space=smem, size = 0x4, offset = 0x4, fixed_abs, tag = 'smem constant byte address 0x4 - core index']
  #allocation1 [shape = 'u32[144,128]{1,0:T(1,128)}', space=vmem, size = 0x12000, scoped, tag = 'internal scratch']
  %s0 = inlined_call_operand.vmem [shape: f32[256,16], index: 0, kind: input, shape index: {}]
  %s1 = inlined_call_operand.vmem [shape: f32[16,32], index: 1, kind: input, shape index: {}]
  %s2 = inlined_call_operand.vmem [shape: f32[1,32], index: 2, kind: input, shape index: {}]
  %s3 = inlined_call_operand.vmem [shape: f32[32,16], index: 3, kind: input, shape index: {}]
  %s4 = inlined_call_operand.vmem [shape: f32[1,16], index: 4, kind: input, shape index: {}]
  %s5 = inlined_call_operand.vmem [shape: f32[16,128], index: 5, kind: input, shape index: {}]
  %s6 = inlined_call_operand.vmem [shape: f32[1,128], index: 6, kind: input, shape index: {}]
  %s7 = inlined_call_operand.vmem [shape: f32[256,128], index: 7, kind: output, shape index: {}]
  %s8 = sld [smem:[#allocation0]]
  $region38: #{mlp_forward.1} parent=0
    _
  %s10 = ssub.s32 1, %s8
  %s11 = scalar_select 0, %s10, %s8
  // Predicated region
  $region2: #{mlp_forward.1} parent=0 // pred_check
    _
  $region3: #{mlp_forward.1} parent=0 // pred_check_branch
    %13 = sbr.rel (0) target = $region5
  $region4: #{mlp_forward.1} parent=0 // pred_region
    _
  $region5: #{mlp_forward.1} parent=0 // pred_fallthru
    _
  // Predicated region
  $region6: #{mlp_forward.1} parent=0 // pred_check
    _
  $region7: #{mlp_forward.1} parent=0 // pred_check_branch
    %15 = sbr.rel (0) target = $region9
  $region8: #{mlp_forward.1} parent=0 // pred_region
    _
  $region9: #{mlp_forward.1} parent=0 // pred_fallthru
    _
  // Predicated region
  $region10: #{mlp_forward.1} parent=0 // pred_check
    _
  $region11: #{mlp_forward.1} parent=0 // pred_check_branch
    %17 = sbr.rel (0) target = $region13
  $region12: #{mlp_forward.1} parent=0 // pred_region
    _
  $region13: #{mlp_forward.1} parent=0 // pred_fallthru
    _
  // Predicated region
  $region14: #{mlp_forward.1} parent=0 // pred_check
    _
  $region15: #{mlp_forward.1} parent=0 // pred_check_branch
    %19 = sbr.rel (0) target = $region17
  $region16: #{mlp_forward.1} parent=0 // pred_region
    _
  $region17: #{mlp_forward.1} parent=0 // pred_fallthru
    _
  // Predicated region
  $region18: #{mlp_forward.1} parent=0 // pred_check
    _
  $region19: #{mlp_forward.1} parent=0 // pred_check_branch
    %21 = sbr.rel (0) target = $region21
  $region20: #{mlp_forward.1} parent=0 // pred_region
    _
  $region21: #{mlp_forward.1} parent=0 // pred_fallthru
    _
  // Predicated region
  $region22: #{mlp_forward.1} parent=0 // pred_check
    _
  $region23: #{mlp_forward.1} parent=0 // pred_check_branch
    %23 = sbr.rel (0) target = $region25
  $region24: #{mlp_forward.1} parent=0 // pred_region
    _
  $region25: #{mlp_forward.1} parent=0 // pred_fallthru
    _
  // Predicated region
  $region26: #{mlp_forward.1} parent=0 // pred_check
    _
  $region27: #{mlp_forward.1} parent=0 // pred_check_branch
    %25 = sbr.rel (0) target = $region29
  $region28: #{mlp_forward.1} parent=0 // pred_region
    _
  $region29: #{mlp_forward.1} parent=0 // pred_fallthru
    _
  %v26 = vld [vmem:[%s0] sm:$0xff]
  %v27 = vld [vmem:[%s0 + $0x8] sm:$0xff]
  %v28 = vld [vmem:[%s0 + $0x10] sm:$0xff]
  %v29 = vld [vmem:[%s0 + $0x18] sm:$0xff]
  %v30 = vld [vmem:[%s0 + $0x20] sm:$0xff]
  %v31 = vld [vmem:[%s0 + $0x28] sm:$0xff]
  %v32 = vld [vmem:[%s0 + $0x30] sm:$0xff]
  %v33 = vld [vmem:[%s0 + $0x38] sm:$0xff]
  %v34 = vld [vmem:[%s0 + $0x40] sm:$0xff]
  %v35 = vld [vmem:[%s0 + $0x48] sm:$0xff]
  %v36 = vld [vmem:[%s0 + $0x50] sm:$0xff]
  %v37 = vld [vmem:[%s0 + $0x58] sm:$0xff]
  %v38 = vld [vmem:[%s0 + $0x60] sm:$0xff]
  %v39 = vld [vmem:[%s0 + $0x68] sm:$0xff]
  %v40 = vld [vmem:[%s0 + $0x70] sm:$0xff]
  %v41 = vld [vmem:[%s0 + $0x78] sm:$0xff]
  %v42 = vld [vmem:[%s0 + $0x80] sm:$0xff]
  %v43 = vld [vmem:[%s0 + $0x88] sm:$0xff]
  %v44 = vld [vmem:[%s0 + $0x90] sm:$0xff]
  %v45 = vld [vmem:[%s0 + $0x98] sm:$0xff]
  %v46 = vld [vmem:[%s0 + $0xa0] sm:$0xff]
  %v47 = vld [vmem:[%s0 + $0xa8] sm:$0xff]
  %v48 = vld [vmem:[%s0 + $0xb0] sm:$0xff]
  %v49 = vld [vmem:[%s0 + $0xb8] sm:$0xff]
  %v50 = vld [vmem:[%s0 + $0xc0] sm:$0xff]
  %v51 = vld [vmem:[%s0 + $0xc8] sm:$0xff]
  %v52 = vld [vmem:[%s0 + $0xd0] sm:$0xff]
  %v53 = vld [vmem:[%s0 + $0xd8] sm:$0xff]
  %v54 = vld [vmem:[%s0 + $0xe0] sm:$0xff]
  %v55 = vld [vmem:[%s0 + $0xe8] sm:$0xff]
  %v56 = vld [vmem:[%s0 + $0xf0] sm:$0xff]
  %v57 = vld [vmem:[%s0 + $0xf8] sm:$0xff]
  %v58 = vld [vmem:[%s1] sm:$0xff]
  %v59 = vld [vmem:[%s1 + $0x8] sm:$0xff]
  %v60 = vld [vmem:[%s2] sm:$0x1]
  %v62 = vlaneseq
  %v63 = vshrl.u32 %v62, 7
  %v64 = vsub.s32 0, %v63
  %v65 = vrot.slane %v60, %v64
  %vm67 = vcmask 130048
  %v69 = vsel %vm67, %v26, 0
  %v72 = vsel %vm67, %v27, 0
  %v75 = vsel %vm67, %v28, 0
  %v78 = vsel %vm67, %v29, 0
  %v81 = vsel %vm67, %v30, 0
  %v84 = vsel %vm67, %v31, 0
  %v87 = vsel %vm67, %v32, 0
  %v90 = vsel %vm67, %v33, 0
  %v93 = vsel %vm67, %v34, 0
  %v96 = vsel %vm67, %v35, 0
  %v99 = vsel %vm67, %v36, 0
  %v102 = vsel %vm67, %v37, 0
  %v105 = vsel %vm67, %v38, 0
  %v108 = vsel %vm67, %v39, 0
  %v111 = vsel %vm67, %v40, 0
  %v114 = vsel %vm67, %v41, 0
  %v117 = vsel %vm67, %v42, 0
  %v120 = vsel %vm67, %v43, 0
  %v123 = vsel %vm67, %v44, 0
  %v126 = vsel %vm67, %v45, 0
  %v129 = vsel %vm67, %v46, 0
  %v132 = vsel %vm67, %v47, 0
  %v135 = vsel %vm67, %v48, 0
  %v138 = vsel %vm67, %v49, 0
  %v141 = vsel %vm67, %v50, 0
  %v144 = vsel %vm67, %v51, 0
  %v147 = vsel %vm67, %v52, 0
  %v150 = vsel %vm67, %v53, 0
  %v153 = vsel %vm67, %v54, 0
  %v156 = vsel %vm67, %v55, 0
  %v159 = vsel %vm67, %v56, 0
  %v162 = vsel %vm67, %v57, 0
  %164 = vmatprep.subr.mxu0 0.0
  %165 = vmatpush1.msra.mxu0 %v58
  %166 = vmatprep.subr.mxu0 0.0
  %167 = vmatpush1.msra.mxu0 %v59
  %168 = vmatprep.subr.mxu0 0.0
  %169 = vmatpush1.msra.mxu0 0.0
  %170 = vmatprep.subr.mxu0 0.0
  %171 = vmatpush1.msra.mxu0 0.0
  %172 = vmatprep.subr.mxu0 0.0
  %173 = vmatpush1.msra.mxu0 0.0
  %174 = vmatprep.subr.mxu0 0.0
  %175 = vmatpush1.msra.mxu0 0.0
  %176 = vmatprep.subr.mxu0 0.0
  %177 = vmatpush1.msra.mxu0 0.0
  %178 = vmatprep.subr.mxu0 0.0
  %179 = vmatpush1.msra.mxu0 0.0
  %180 = vmatprep.subr.mxu0 0.0
  %181 = vmatpush1.msra.mxu0 0.0
  %182 = vmatprep.subr.mxu0 0.0
  %183 = vmatpush1.msra.mxu0 0.0
  %184 = vmatprep.subr.mxu0 0.0
  %185 = vmatpush1.msra.mxu0 0.0
  %186 = vmatprep.subr.mxu0 0.0
  %187 = vmatpush1.msra.mxu0 0.0
  %188 = vmatprep.subr.mxu0 0.0
  %189 = vmatpush1.msra.mxu0 0.0
  %190 = vmatprep.subr.mxu0 0.0
  %191 = vmatpush1.msra.mxu0 0.0
  %192 = vmatprep.subr.mxu0 0.0
  %193 = vmatpush1.msra.mxu0 0.0
  %194 = vmatprep.subr.mxu0 0.0
  %195 = vmatpush1.msra.mxu0 0.0
  %196 = vmatprep.subr.mxu0 0.0
  %197 = vmatpush1.msra.mxu0 0.0
  %198 = vmatprep.subr.mxu0 0.0
  %199 = vmatpush1.msra.mxu0 0.0
  %200 = vmatprep.subr.mxu0 0.0
  %201 = vmatpush1.msra.mxu0 0.0
  %202 = vmatprep.subr.mxu0 0.0
  %203 = vmatpush1.msra.mxu0 0.0
  %204 = vmatprep.subr.mxu0 0.0
  %205 = vmatpush1.msra.mxu0 0.0
  %206 = vmatprep.subr.mxu0 0.0
  %207 = vmatpush1.msra.mxu0 0.0
  %208 = vmatprep.subr.mxu0 0.0
  %209 = vmatpush1.msra.mxu0 0.0
  %210 = vmatprep.subr.mxu0 0.0
  %211 = vmatpush1.msra.mxu0 0.0
  %212 = vmatprep.subr.mxu0 0.0
  %213 = vmatpush1.msra.mxu0 0.0
  %214 = vmatprep.subr.mxu0 0.0
  %215 = vmatpush1.msra.mxu0 0.0
  %216 = vmatprep.subr.mxu0 0.0
  %217 = vmatpush1.msra.mxu0 0.0
  %218 = vmatprep.subr.mxu0 0.0
  %219 = vmatpush1.msra.mxu0 0.0
  %220 = vmatprep.subr.mxu0 0.0
  %221 = vmatpush1.msra.mxu0 0.0
  %222 = vmatprep.subr.mxu0 0.0
  %223 = vmatpush1.msra.mxu0 0.0
  %224 = vmatprep.subr.mxu0 0.0
  %225 = vmatpush1.msra.mxu0 0.0
  %226 = vmatprep.subr.mxu0 0.0
  %227 = vmatpush1.msra.mxu0 0.0
  %228 = vmatprep.mubr.f32.mxu0 0.0
  %229 = vmatmul.mubr.f32.gmra.mrb[0].mxu0 %v69
  %v230 = vpop.f32.mrb[0].mxu0
  %v231 = vadd.f32 %v65, %v230
  %v232 = vpop.f32.mrb[0].mxu0
  %233 = vmatprep.mubr.f32.mxu0 0.0
  %234 = vmatmul.mubr.f32.gmra.mrb[0].mxu0 %v72
  %v235 = vpop.f32.mrb[0].mxu0
  %v236 = vadd.f32 %v65, %v235
  %v237 = vpop.f32.mrb[0].mxu0
  %238 = vmatprep.mubr.f32.mxu0 0.0
  %239 = vmatmul.mubr.f32.gmra.mrb[0].mxu0 %v75
  %v240 = vpop.f32.mrb[0].mxu0
  %v241 = vadd.f32 %v65, %v240
  %v242 = vpop.f32.mrb[0].mxu0
  %243 = vmatprep.mubr.f32.mxu0 0.0
  %244 = vmatmul.mubr.f32.gmra.mrb[0].mxu0 %v78
  %v245 = vpop.f32.mrb[0].mxu0
  %v246 = vadd.f32 %v65, %v245
  %v247 = vpop.f32.mrb[0].mxu0
  %248 = vmatprep.mubr.f32.mxu0 0.0
  %249 = vmatmul.mubr.f32.gmra.mrb[0].mxu0 %v81
  %v250 = vpop.f32.mrb[0].mxu0
  %v251 = vadd.f32 %v65, %v250
  %v252 = vpop.f32.mrb[0].mxu0
  %253 = vmatprep.mubr.f32.mxu0 0.0
  %254 = vmatmul.mubr.f32.gmra.mrb[0].mxu0 %v84
  %v255 = vpop.f32.mrb[0].mxu0
  %v256 = vadd.f32 %v65, %v255
  %v257 = vpop.f32.mrb[0].mxu0
  %258 = vmatprep.mubr.f32.mxu0 0.0
  %259 = vmatmul.mubr.f32.gmra.mrb[0].mxu0 %v87
  %v260 = vpop.f32.mrb[0].mxu0
  %v261 = vadd.f32 %v65, %v260
  %v262 = vpop.f32.mrb[0].mxu0
  %263 = vmatprep.mubr.f32.mxu0 0.0
  %264 = vmatmul.mubr.f32.gmra.mrb[0].mxu0 %v90
  %v265 = vpop.f32.mrb[0].mxu0
  %v266 = vadd.f32 %v65, %v265
  %v267 = vpop.f32.mrb[0].mxu0
  %268 = vmatprep.mubr.f32.mxu0 0.0
  %269 = vmatmul.mubr.f32.gmra.mrb[0].mxu0 %v93
  %v270 = vpop.f32.mrb[0].mxu0
  %v271 = vadd.f32 %v65, %v270
  %v272 = vpop.f32.mrb[0].mxu0
  %273 = vmatprep.mubr.f32.mxu0 0.0
  %274 = vmatmul.mubr.f32.gmra.mrb[0].mxu0 %v96
  %v275 = vpop.f32.mrb[0].mxu0
  %v276 = vadd.f32 %v65, %v275
  %v277 = vpop.f32.mrb[0].mxu0
  %278 = vmatprep.mubr.f32.mxu0 0.0
  %279 = vmatmul.mubr.f32.gmra.mrb[0].mxu0 %v99
  %v280 = vpop.f32.mrb[0].mxu0
  %v281 = vadd.f32 %v65, %v280
  %v282 = vpop.f32.mrb[0].mxu0
  %283 = vmatprep.mubr.f32.mxu0 0.0
  %284 = vmatmul.mubr.f32.gmra.mrb[0].mxu0 %v102
  %v285 = vpop.f32.mrb[0].mxu0
  %v286 = vadd.f32 %v65, %v285
  %v287 = vpop.f32.mrb[0].mxu0
  %288 = vmatprep.mubr.f32.mxu0 0.0
  %289 = vmatmul.mubr.f32.gmra.mrb[0].mxu0 %v105
  %v290 = vpop.f32.mrb[0].mxu0
  %v291 = vadd.f32 %v65, %v290
  %v292 = vpop.f32.mrb[0].mxu0
  %293 = vmatprep.mubr.f32.mxu0 0.0
  %294 = vmatmul.mubr.f32.gmra.mrb[0].mxu0 %v108
  %v295 = vpop.f32.mrb[0].mxu0
  %v296 = vadd.f32 %v65, %v295
  %v297 = vpop.f32.mrb[0].mxu0
  %298 = vmatprep.mubr.f32.mxu0 0.0
  %299 = vmatmul.mubr.f32.gmra.mrb[0].mxu0 %v111
  %v300 = vpop.f32.mrb[0].mxu0
  %v301 = vadd.f32 %v65, %v300
  %v302 = vpop.f32.mrb[0].mxu0
  %303 = vmatprep.mubr.f32.mxu0 0.0
  %304 = vmatmul.mubr.f32.gmra.mrb[0].mxu0 %v114
  %v305 = vpop.f32.mrb[0].mxu0
  %v306 = vadd.f32 %v65, %v305
  %v307 = vpop.f32.mrb[0].mxu0
  %308 = vmatprep.mubr.f32.mxu0 0.0
  %309 = vmatmul.mubr.f32.gmra.mrb[0].mxu0 %v117
  %v310 = vpop.f32.mrb[0].mxu0
  %v311 = vadd.f32 %v65, %v310
  %v312 = vpop.f32.mrb[0].mxu0
  %313 = vmatprep.mubr.f32.mxu0 0.0
  %314 = vmatmul.mubr.f32.gmra.mrb[0].mxu0 %v120
  %v315 = vpop.f32.mrb[0].mxu0
  %v316 = vadd.f32 %v65, %v315
  %v317 = vpop.f32.mrb[0].mxu0
  %318 = vmatprep.mubr.f32.mxu0 0.0
  %319 = vmatmul.mubr.f32.gmra.mrb[0].mxu0 %v123
  %v320 = vpop.f32.mrb[0].mxu0
  %v321 = vadd.f32 %v65, %v320
  %v322 = vpop.f32.mrb[0].mxu0
  %323 = vmatprep.mubr.f32.mxu0 0.0
  %324 = vmatmul.mubr.f32.gmra.mrb[0].mxu0 %v126
  %v325 = vpop.f32.mrb[0].mxu0
  %v326 = vadd.f32 %v65, %v325
  %v327 = vpop.f32.mrb[0].mxu0
  %328 = vmatprep.mubr.f32.mxu0 0.0
  %329 = vmatmul.mubr.f32.gmra.mrb[0].mxu0 %v129
  %v330 = vpop.f32.mrb[0].mxu0
  %v331 = vadd.f32 %v65, %v330
  %v332 = vpop.f32.mrb[0].mxu0
  %333 = vmatprep.mubr.f32.mxu0 0.0
  %334 = vmatmul.mubr.f32.gmra.mrb[0].mxu0 %v132
  %v335 = vpop.f32.mrb[0].mxu0
  %v336 = vadd.f32 %v65, %v335
  %v337 = vpop.f32.mrb[0].mxu0
  %338 = vmatprep.mubr.f32.mxu0 0.0
  %339 = vmatmul.mubr.f32.gmra.mrb[0].mxu0 %v135
  %v340 = vpop.f32.mrb[0].mxu0
  %v341 = vadd.f32 %v65, %v340
  %v342 = vpop.f32.mrb[0].mxu0
  %343 = vmatprep.mubr.f32.mxu0 0.0
  %344 = vmatmul.mubr.f32.gmra.mrb[0].mxu0 %v138
  %v345 = vpop.f32.mrb[0].mxu0
  %v346 = vadd.f32 %v65, %v345
  %v347 = vpop.f32.mrb[0].mxu0
  %348 = vmatprep.mubr.f32.mxu0 0.0
  %349 = vmatmul.mubr.f32.gmra.mrb[0].mxu0 %v141
  %v350 = vpop.f32.mrb[0].mxu0
  %v351 = vadd.f32 %v65, %v350
  %v352 = vpop.f32.mrb[0].mxu0
  %353 = vmatprep.mubr.f32.mxu0 0.0
  %354 = vmatmul.mubr.f32.gmra.mrb[0].mxu0 %v144
  %v355 = vpop.f32.mrb[0].mxu0
  %v356 = vadd.f32 %v65, %v355
  %v357 = vpop.f32.mrb[0].mxu0
  %358 = vmatprep.mubr.f32.mxu0 0.0
  %359 = vmatmul.mubr.f32.gmra.mrb[0].mxu0 %v147
  %v360 = vpop.f32.mrb[0].mxu0
  %v361 = vadd.f32 %v65, %v360
  %v362 = vpop.f32.mrb[0].mxu0
  %363 = vmatprep.mubr.f32.mxu0 0.0
  %364 = vmatmul.mubr.f32.gmra.mrb[0].mxu0 %v150
  %v365 = vpop.f32.mrb[0].mxu0
  %v366 = vadd.f32 %v65, %v365
  %v367 = vpop.f32.mrb[0].mxu0
  %368 = vmatprep.mubr.f32.mxu0 0.0
  %369 = vmatmul.mubr.f32.gmra.mrb[0].mxu0 %v153
  %v370 = vpop.f32.mrb[0].mxu0
  %v371 = vadd.f32 %v65, %v370
  %v372 = vpop.f32.mrb[0].mxu0
  %373 = vmatprep.mubr.f32.mxu0 0.0
  %374 = vmatmul.mubr.f32.gmra.mrb[0].mxu0 %v156
  %v375 = vpop.f32.mrb[0].mxu0
  %v376 = vadd.f32 %v65, %v375
  %v377 = vpop.f32.mrb[0].mxu0
  %378 = vmatprep.mubr.f32.mxu0 0.0
  %379 = vmatmul.mubr.f32.gmra.mrb[0].mxu0 %v159
  %v380 = vpop.f32.mrb[0].mxu0
  %v381 = vadd.f32 %v65, %v380
  %v382 = vpop.f32.mrb[0].mxu0
  %383 = vmatprep.mubr.f32.mxu0 0.0
  %384 = vmatmul.mubr.f32.gmra.mrb[0].mxu0 %v162
  %v385 = vpop.f32.mrb[0].mxu0
  %v386 = vadd.f32 %v65, %v385
  %v387 = vpop.f32.mrb[0].mxu0
  %388 = vdwg.mxu0
  %v389 = vmax.f32 %v231, 0.0
  %v390 = vmax.f32 %v236, 0.0
  %v391 = vmax.f32 %v241, 0.0
  %v392 = vmax.f32 %v246, 0.0
  %v393 = vmax.f32 %v251, 0.0
  %v394 = vmax.f32 %v256, 0.0
  %v395 = vmax.f32 %v261, 0.0
  %v396 = vmax.f32 %v266, 0.0
  %v397 = vmax.f32 %v271, 0.0
  %v398 = vmax.f32 %v276, 0.0
  %v399 = vmax.f32 %v281, 0.0
  %v400 = vmax.f32 %v286, 0.0
  %v401 = vmax.f32 %v291, 0.0
  %v402 = vmax.f32 %v296, 0.0
  %v403 = vmax.f32 %v301, 0.0
  %v404 = vmax.f32 %v306, 0.0
  %v405 = vmax.f32 %v311, 0.0
  %v406 = vmax.f32 %v316, 0.0
  %v407 = vmax.f32 %v321, 0.0
  %v408 = vmax.f32 %v326, 0.0
  %v409 = vmax.f32 %v331, 0.0
  %v410 = vmax.f32 %v336, 0.0
  %v411 = vmax.f32 %v341, 0.0
  %v412 = vmax.f32 %v346, 0.0
  %v413 = vmax.f32 %v351, 0.0
  %v414 = vmax.f32 %v356, 0.0
  %v415 = vmax.f32 %v361, 0.0
  %v416 = vmax.f32 %v366, 0.0
  %v417 = vmax.f32 %v371, 0.0
  %v418 = vmax.f32 %v376, 0.0
  %v419 = vmax.f32 %v381, 0.0
  %v420 = vmax.f32 %v386, 0.0
  %v421 = vld [vmem:[%s3] sm:$0xff]
  %v422 = vld [vmem:[%s3 + $0x8] sm:$0xff]
  %v423 = vld [vmem:[%s3 + $0x10] sm:$0xff]
  %v424 = vld [vmem:[%s3 + $0x18] sm:$0xff]
  %v425 = vld [vmem:[%s4] sm:$0x1]
  %v427 = vlaneseq
  %v428 = vshrl.u32 %v427, 7
  %v429 = vsub.s32 0, %v428
  %v430 = vrot.slane %v425, %v429
  %vm432 = vcmask 261120
  %v434 = vsel %vm432, %v389, 0
  %v437 = vsel %vm432, %v390, 0
  %v440 = vsel %vm432, %v391, 0
  %v443 = vsel %vm432, %v392, 0
  %v446 = vsel %vm432, %v393, 0
  %v449 = vsel %vm432, %v394, 0
  %v452 = vsel %vm432, %v395, 0
  %v455 = vsel %vm432, %v396, 0
  %v458 = vsel %vm432, %v397, 0
  %v461 = vsel %vm432, %v398, 0
  %v464 = vsel %vm432, %v399, 0
  %v467 = vsel %vm432, %v400, 0
  %v470 = vsel %vm432, %v401, 0
  %v473 = vsel %vm432, %v402, 0
  %v476 = vsel %vm432, %v403, 0
  %v479 = vsel %vm432, %v404, 0
  %v482 = vsel %vm432, %v405, 0
  %v485 = vsel %vm432, %v406, 0
  %v488 = vsel %vm432, %v407, 0
  %v491 = vsel %vm432, %v408, 0
  %v494 = vsel %vm432, %v409, 0
  %v497 = vsel %vm432, %v410, 0
  %v500 = vsel %vm432, %v411, 0
  %v503 = vsel %vm432, %v412, 0
  %v506 = vsel %vm432, %v413, 0
  %v509 = vsel %vm432, %v414, 0
  %v512 = vsel %vm432, %v415, 0
  %v515 = vsel %vm432, %v416, 0
  %v518 = vsel %vm432, %v417, 0
  %v521 = vsel %vm432, %v418, 0
  %v524 = vsel %vm432, %v419, 0
  %v527 = vsel %vm432, %v420, 0
  %529 = vmatprep.subr.mxu0 0.0
  %530 = vmatpush1.msra.mxu0 %v421
  %531 = vmatprep.subr.mxu0 0.0
  %532 = vmatpush1.msra.mxu0 %v422
  %533 = vmatprep.subr.mxu0 0.0
  %534 = vmatpush1.msra.mxu0 %v423
  %535 = vmatprep.subr.mxu0 0.0
  %536 = vmatpush1.msra.mxu0 %v424
  %537 = vmatprep.subr.mxu0 0.0
  %538 = vmatpush1.msra.mxu0 0.0
  %539 = vmatprep.subr.mxu0 0.0
  %540 = vmatpush1.msra.mxu0 0.0
  %541 = vmatprep.subr.mxu0 0.0
  %542 = vmatpush1.msra.mxu0 0.0
  %543 = vmatprep.subr.mxu0 0.0
  %544 = vmatpush1.msra.mxu0 0.0
  %545 = vmatprep.subr.mxu0 0.0
  %546 = vmatpush1.msra.mxu0 0.0
  %547 = vmatprep.subr.mxu0 0.0
  %548 = vmatpush1.msra.mxu0 0.0
  %549 = vmatprep.subr.mxu0 0.0
  %550 = vmatpush1.msra.mxu0 0.0
  %551 = vmatprep.subr.mxu0 0.0
  %552 = vmatpush1.msra.mxu0 0.0
  %553 = vmatprep.subr.mxu0 0.0
  %554 = vmatpush1.msra.mxu0 0.0
  %555 = vmatprep.subr.mxu0 0.0
  %556 = vmatpush1.msra.mxu0 0.0
  %557 = vmatprep.subr.mxu0 0.0
  %558 = vmatpush1.msra.mxu0 0.0
  %559 = vmatprep.subr.mxu0 0.0
  %560 = vmatpush1.msra.mxu0 0.0
  %561 = vmatprep.subr.mxu0 0.0
  %562 = vmatpush1.msra.mxu0 0.0
  %563 = vmatprep.subr.mxu0 0.0
  %564 = vmatpush1.msra.mxu0 0.0
  %565 = vmatprep.subr.mxu0 0.0
  %566 = vmatpush1.msra.mxu0 0.0
  %567 = vmatprep.subr.mxu0 0.0
  %568 = vmatpush1.msra.mxu0 0.0
  %569 = vmatprep.subr.mxu0 0.0
  %570 = vmatpush1.msra.mxu0 0.0
  %571 = vmatprep.subr.mxu0 0.0
  %572 = vmatpush1.msra.mxu0 0.0
  %573 = vmatprep.subr.mxu0 0.0
  %574 = vmatpush1.msra.mxu0 0.0
  %575 = vmatprep.subr.mxu0 0.0
  %576 = vmatpush1.msra.mxu0 0.0
  %577 = vmatprep.subr.mxu0 0.0
  %578 = vmatpush1.msra.mxu0 0.0
  %579 = vmatprep.subr.mxu0 0.0
  %580 = vmatpush1.msra.mxu0 0.0
  %581 = vmatprep.subr.mxu0 0.0
  %582 = vmatpush1.msra.mxu0 0.0
  %583 = vmatprep.subr.mxu0 0.0
  %584 = vmatpush1.msra.mxu0 0.0
  %585 = vmatprep.subr.mxu0 0.0
  %586 = vmatpush1.msra.mxu0 0.0
  %587 = vmatprep.subr.mxu0 0.0
  %588 = vmatpush1.msra.mxu0 0.0
  %589 = vmatprep.subr.mxu0 0.0
  %590 = vmatpush1.msra.mxu0 0.0
  %591 = vmatprep.subr.mxu0 0.0
  %592 = vmatpush1.msra.mxu0 0.0
  %593 = vmatprep.mubr.f32.mxu0 0.0
  %594 = vmatmul.mubr.f32.gmra.mrb[0].mxu0 %v434
  %v595 = vpop.f32.mrb[0].mxu0
  %v596 = vadd.f32 %v430, %v595
  %v597 = vpop.f32.mrb[0].mxu0
  %598 = vmatprep.mubr.f32.mxu0 0.0
  %599 = vmatmul.mubr.f32.gmra.mrb[0].mxu0 %v437
  %v600 = vpop.f32.mrb[0].mxu0
  %v601 = vadd.f32 %v430, %v600
  %v602 = vpop.f32.mrb[0].mxu0
  %603 = vmatprep.mubr.f32.mxu0 0.0
  %604 = vmatmul.mubr.f32.gmra.mrb[0].mxu0 %v440
  %v605 = vpop.f32.mrb[0].mxu0
  %v606 = vadd.f32 %v430, %v605
  %v607 = vpop.f32.mrb[0].mxu0
  %608 = vmatprep.mubr.f32.mxu0 0.0
  %609 = vmatmul.mubr.f32.gmra.mrb[0].mxu0 %v443
  %v610 = vpop.f32.mrb[0].mxu0
  %v611 = vadd.f32 %v430, %v610
  %v612 = vpop.f32.mrb[0].mxu0
  %613 = vmatprep.mubr.f32.mxu0 0.0
  %614 = vmatmul.mubr.f32.gmra.mrb[0].mxu0 %v446
  %v615 = vpop.f32.mrb[0].mxu0
  %v616 = vadd.f32 %v430, %v615
  %v617 = vpop.f32.mrb[0].mxu0
  %618 = vmatprep.mubr.f32.mxu0 0.0
  %619 = vmatmul.mubr.f32.gmra.mrb[0].mxu0 %v449
  %v620 = vpop.f32.mrb[0].mxu0
  %v621 = vadd.f32 %v430, %v620
  %v622 = vpop.f32.mrb[0].mxu0
  %623 = vmatprep.mubr.f32.mxu0 0.0
  %624 = vmatmul.mubr.f32.gmra.mrb[0].mxu0 %v452
  %v625 = vpop.f32.mrb[0].mxu0
  %v626 = vadd.f32 %v430, %v625
  %v627 = vpop.f32.mrb[0].mxu0
  %628 = vmatprep.mubr.f32.mxu0 0.0
  %629 = vmatmul.mubr.f32.gmra.mrb[0].mxu0 %v455
  %v630 = vpop.f32.mrb[0].mxu0
  %v631 = vadd.f32 %v430, %v630
  %v632 = vpop.f32.mrb[0].mxu0
  %633 = vmatprep.mubr.f32.mxu0 0.0
  %634 = vmatmul.mubr.f32.gmra.mrb[0].mxu0 %v458
  %v635 = vpop.f32.mrb[0].mxu0
  %v636 = vadd.f32 %v430, %v635
  %v637 = vpop.f32.mrb[0].mxu0
  %638 = vmatprep.mubr.f32.mxu0 0.0
  %639 = vmatmul.mubr.f32.gmra.mrb[0].mxu0 %v461
  %v640 = vpop.f32.mrb[0].mxu0
  %v641 = vadd.f32 %v430, %v640
  %v642 = vpop.f32.mrb[0].mxu0
  %643 = vmatprep.mubr.f32.mxu0 0.0
  %644 = vmatmul.mubr.f32.gmra.mrb[0].mxu0 %v464
  %v645 = vpop.f32.mrb[0].mxu0
  %v646 = vadd.f32 %v430, %v645
  %v647 = vpop.f32.mrb[0].mxu0
  %648 = vmatprep.mubr.f32.mxu0 0.0
  %649 = vmatmul.mubr.f32.gmra.mrb[0].mxu0 %v467
  %v650 = vpop.f32.mrb[0].mxu0
  %v651 = vadd.f32 %v430, %v650
  %v652 = vpop.f32.mrb[0].mxu0
  %653 = vmatprep.mubr.f32.mxu0 0.0
  %654 = vmatmul.mubr.f32.gmra.mrb[0].mxu0 %v470
  %v655 = vpop.f32.mrb[0].mxu0
  %v656 = vadd.f32 %v430, %v655
  %v657 = vpop.f32.mrb[0].mxu0
  %658 = vmatprep.mubr.f32.mxu0 0.0
  %659 = vmatmul.mubr.f32.gmra.mrb[0].mxu0 %v473
  %v660 = vpop.f32.mrb[0].mxu0
  %v661 = vadd.f32 %v430, %v660
  %v662 = vpop.f32.mrb[0].mxu0
  %663 = vmatprep.mubr.f32.mxu0 0.0
  %664 = vmatmul.mubr.f32.gmra.mrb[0].mxu0 %v476
  %v665 = vpop.f32.mrb[0].mxu0
  %v666 = vadd.f32 %v430, %v665
  %v667 = vpop.f32.mrb[0].mxu0
  %668 = vmatprep.mubr.f32.mxu0 0.0
  %669 = vmatmul.mubr.f32.gmra.mrb[0].mxu0 %v479
  %v670 = vpop.f32.mrb[0].mxu0
  %v671 = vadd.f32 %v430, %v670
  %v672 = vpop.f32.mrb[0].mxu0
  %673 = vmatprep.mubr.f32.mxu0 0.0
  %674 = vmatmul.mubr.f32.gmra.mrb[0].mxu0 %v482
  %v675 = vpop.f32.mrb[0].mxu0
  %v676 = vadd.f32 %v430, %v675
  %v677 = vpop.f32.mrb[0].mxu0
  %678 = vmatprep.mubr.f32.mxu0 0.0
  %679 = vmatmul.mubr.f32.gmra.mrb[0].mxu0 %v485
  %v680 = vpop.f32.mrb[0].mxu0
  %v681 = vadd.f32 %v430, %v680
  %v682 = vpop.f32.mrb[0].mxu0
  %683 = vmatprep.mubr.f32.mxu0 0.0
  %684 = vmatmul.mubr.f32.gmra.mrb[0].mxu0 %v488
  %v685 = vpop.f32.mrb[0].mxu0
  %v686 = vadd.f32 %v430, %v685
  %v687 = vpop.f32.mrb[0].mxu0
  %688 = vmatprep.mubr.f32.mxu0 0.0
  %689 = vmatmul.mubr.f32.gmra.mrb[0].mxu0 %v491
  %v690 = vpop.f32.mrb[0].mxu0
  %v691 = vadd.f32 %v430, %v690
  %v692 = vpop.f32.mrb[0].mxu0
  %693 = vmatprep.mubr.f32.mxu0 0.0
  %694 = vmatmul.mubr.f32.gmra.mrb[0].mxu0 %v494
  %v695 = vpop.f32.mrb[0].mxu0
  %v696 = vadd.f32 %v430, %v695
  %v697 = vpop.f32.mrb[0].mxu0
  %698 = vmatprep.mubr.f32.mxu0 0.0
  %699 = vmatmul.mubr.f32.gmra.mrb[0].mxu0 %v497
  %v700 = vpop.f32.mrb[0].mxu0
  %v701 = vadd.f32 %v430, %v700
  %v702 = vpop.f32.mrb[0].mxu0
  %703 = vmatprep.mubr.f32.mxu0 0.0
  %704 = vmatmul.mubr.f32.gmra.mrb[0].mxu0 %v500
  %v705 = vpop.f32.mrb[0].mxu0
  %v706 = vadd.f32 %v430, %v705
  %v707 = vpop.f32.mrb[0].mxu0
  %708 = vmatprep.mubr.f32.mxu0 0.0
  %709 = vmatmul.mubr.f32.gmra.mrb[0].mxu0 %v503
  %v710 = vpop.f32.mrb[0].mxu0
  %v711 = vadd.f32 %v430, %v710
  %v712 = vpop.f32.mrb[0].mxu0
  %713 = vmatprep.mubr.f32.mxu0 0.0
  %714 = vmatmul.mubr.f32.gmra.mrb[0].mxu0 %v506
  %v715 = vpop.f32.mrb[0].mxu0
  %v716 = vadd.f32 %v430, %v715
  %v717 = vpop.f32.mrb[0].mxu0
  %718 = vmatprep.mubr.f32.mxu0 0.0
  %719 = vmatmul.mubr.f32.gmra.mrb[0].mxu0 %v509
  %v720 = vpop.f32.mrb[0].mxu0
  %v721 = vadd.f32 %v430, %v720
  %v722 = vpop.f32.mrb[0].mxu0
  %723 = vmatprep.mubr.f32.mxu0 0.0
  %724 = vmatmul.mubr.f32.gmra.mrb[0].mxu0 %v512
  %v725 = vpop.f32.mrb[0].mxu0
  %v726 = vadd.f32 %v430, %v725
  %v727 = vpop.f32.mrb[0].mxu0
  %728 = vmatprep.mubr.f32.mxu0 0.0
  %729 = vmatmul.mubr.f32.gmra.mrb[0].mxu0 %v515
  %v730 = vpop.f32.mrb[0].mxu0
  %v731 = vadd.f32 %v430, %v730
  %v732 = vpop.f32.mrb[0].mxu0
  %733 = vmatprep.mubr.f32.mxu0 0.0
  %734 = vmatmul.mubr.f32.gmra.mrb[0].mxu0 %v518
  %v735 = vpop.f32.mrb[0].mxu0
  %v736 = vadd.f32 %v430, %v735
  %v737 = vpop.f32.mrb[0].mxu0
  %738 = vmatprep.mubr.f32.mxu0 0.0
  %739 = vmatmul.mubr.f32.gmra.mrb[0].mxu0 %v521
  %v740 = vpop.f32.mrb[0].mxu0
  %v741 = vadd.f32 %v430, %v740
  %v742 = vpop.f32.mrb[0].mxu0
  %743 = vmatprep.mubr.f32.mxu0 0.0
  %744 = vmatmul.mubr.f32.gmra.mrb[0].mxu0 %v524
  %v745 = vpop.f32.mrb[0].mxu0
  %v746 = vadd.f32 %v430, %v745
  %v747 = vpop.f32.mrb[0].mxu0
  %748 = vmatprep.mubr.f32.mxu0 0.0
  %749 = vmatmul.mubr.f32.gmra.mrb[0].mxu0 %v527
  %v750 = vpop.f32.mrb[0].mxu0
  %v751 = vadd.f32 %v430, %v750
  %v752 = vpop.f32.mrb[0].mxu0
  %753 = vdwg.mxu0
  %v754 = vmax.f32 %v596, 0.0
  %v755 = vmax.f32 %v601, 0.0
  %v756 = vmax.f32 %v606, 0.0
  %v757 = vmax.f32 %v611, 0.0
  %v758 = vmax.f32 %v616, 0.0
  %v759 = vmax.f32 %v621, 0.0
  %v760 = vmax.f32 %v626, 0.0
  %v761 = vmax.f32 %v631, 0.0
  %v762 = vmax.f32 %v636, 0.0
  %v763 = vmax.f32 %v641, 0.0
  %v764 = vmax.f32 %v646, 0.0
  %v765 = vmax.f32 %v651, 0.0
  %v766 = vmax.f32 %v656, 0.0
  %v767 = vmax.f32 %v661, 0.0
  %v768 = vmax.f32 %v666, 0.0
  %v769 = vmax.f32 %v671, 0.0
  %v770 = vmax.f32 %v676, 0.0
  %v771 = vmax.f32 %v681, 0.0
  %v772 = vmax.f32 %v686, 0.0
  %v773 = vmax.f32 %v691, 0.0
  %v774 = vmax.f32 %v696, 0.0
  %v775 = vmax.f32 %v701, 0.0
  %v776 = vmax.f32 %v706, 0.0
  %v777 = vmax.f32 %v711, 0.0
  %v778 = vmax.f32 %v716, 0.0
  %v779 = vmax.f32 %v721, 0.0
  %v780 = vmax.f32 %v726, 0.0
  %v781 = vmax.f32 %v731, 0.0
  %v782 = vmax.f32 %v736, 0.0
  %v783 = vmax.f32 %v741, 0.0
  %v784 = vmax.f32 %v746, 0.0
  %v785 = vmax.f32 %v751, 0.0
  %v786 = vld [vmem:[%s5] sm:$0xff]
  %v787 = vld [vmem:[%s5 + $0x8] sm:$0xff]
  %v788 = vld [vmem:[%s6] sm:$0x1]
  %v790 = vlaneseq
  %v791 = vshrl.u32 %v790, 7
  %v792 = vsub.s32 0, %v791
  %v793 = vrot.slane %v788, %v792
  %v796 = vsel %vm67, %v754, 0
  %v799 = vsel %vm67, %v755, 0
  %v802 = vsel %vm67, %v756, 0
  %v805 = vsel %vm67, %v757, 0
  %v808 = vsel %vm67, %v758, 0
  %v811 = vsel %vm67, %v759, 0
  %v814 = vsel %vm67, %v760, 0
  %v817 = vsel %vm67, %v761, 0
  %v820 = vsel %vm67, %v762, 0
  %v823 = vsel %vm67, %v763, 0
  %v826 = vsel %vm67, %v764, 0
  %v829 = vsel %vm67, %v765, 0
  %v832 = vsel %vm67, %v766, 0
  %v835 = vsel %vm67, %v767, 0
  %v838 = vsel %vm67, %v768, 0
  %v841 = vsel %vm67, %v769, 0
  %v844 = vsel %vm67, %v770, 0
  %v847 = vsel %vm67, %v771, 0
  %v850 = vsel %vm67, %v772, 0
  %v853 = vsel %vm67, %v773, 0
  %v856 = vsel %vm67, %v774, 0
  %v859 = vsel %vm67, %v775, 0
  %v862 = vsel %vm67, %v776, 0
  %v865 = vsel %vm67, %v777, 0
  %v868 = vsel %vm67, %v778, 0
  %v871 = vsel %vm67, %v779, 0
  %v874 = vsel %vm67, %v780, 0
  %v877 = vsel %vm67, %v781, 0
  %v880 = vsel %vm67, %v782, 0
  %v883 = vsel %vm67, %v783, 0
  %v886 = vsel %vm67, %v784, 0
  %v889 = vsel %vm67, %v785, 0
  %891 = vmatprep.subr.mxu0 0.0
  %892 = vmatpush1.msra.mxu0 %v786
  %893 = vmatprep.subr.mxu0 0.0
  %894 = vmatpush1.msra.mxu0 %v787
  %895 = vmatprep.subr.mxu0 0.0
  %896 = vmatpush1.msra.mxu0 0.0
  %897 = vmatprep.subr.mxu0 0.0
  %898 = vmatpush1.msra.mxu0 0.0
  %899 = vmatprep.subr.mxu0 0.0
  %900 = vmatpush1.msra.mxu0 0.0
  %901 = vmatprep.subr.mxu0 0.0
  %902 = vmatpush1.msra.mxu0 0.0
  %903 = vmatprep.subr.mxu0 0.0
  %904 = vmatpush1.msra.mxu0 0.0
  %905 = vmatprep.subr.mxu0 0.0
  %906 = vmatpush1.msra.mxu0 0.0
  %907 = vmatprep.subr.mxu0 0.0
  %908 = vmatpush1.msra.mxu0 0.0
  %909 = vmatprep.subr.mxu0 0.0
  %910 = vmatpush1.msra.mxu0 0.0
  %911 = vmatprep.subr.mxu0 0.0
  %912 = vmatpush1.msra.mxu0 0.0
  %913 = vmatprep.subr.mxu0 0.0
  %914 = vmatpush1.msra.mxu0 0.0
  %915 = vmatprep.subr.mxu0 0.0
  %916 = vmatpush1.msra.mxu0 0.0
  %917 = vmatprep.subr.mxu0 0.0
  %918 = vmatpush1.msra.mxu0 0.0
  %919 = vmatprep.subr.mxu0 0.0
  %920 = vmatpush1.msra.mxu0 0.0
  %921 = vmatprep.subr.mxu0 0.0
  %922 = vmatpush1.msra.mxu0 0.0
  %923 = vmatprep.subr.mxu0 0.0
  %924 = vmatpush1.msra.mxu0 0.0
  %925 = vmatprep.subr.mxu0 0.0
  %926 = vmatpush1.msra.mxu0 0.0
  %927 = vmatprep.subr.mxu0 0.0
  %928 = vmatpush1.msra.mxu0 0.0
  %929 = vmatprep.subr.mxu0 0.0
  %930 = vmatpush1.msra.mxu0 0.0
  %931 = vmatprep.subr.mxu0 0.0
  %932 = vmatpush1.msra.mxu0 0.0
  %933 = vmatprep.subr.mxu0 0.0
  %934 = vmatpush1.msra.mxu0 0.0
  %935 = vmatprep.subr.mxu0 0.0
  %936 = vmatpush1.msra.mxu0 0.0
  %937 = vmatprep.subr.mxu0 0.0
  %938 = vmatpush1.msra.mxu0 0.0
  %939 = vmatprep.subr.mxu0 0.0
  %940 = vmatpush1.msra.mxu0 0.0
  %941 = vmatprep.subr.mxu0 0.0
  %942 = vmatpush1.msra.mxu0 0.0
  %943 = vmatprep.subr.mxu0 0.0
  %944 = vmatpush1.msra.mxu0 0.0
  %945 = vmatprep.subr.mxu0 0.0
  %946 = vmatpush1.msra.mxu0 0.0
  %947 = vmatprep.subr.mxu0 0.0
  %948 = vmatpush1.msra.mxu0 0.0
  %949 = vmatprep.subr.mxu0 0.0
  %950 = vmatpush1.msra.mxu0 0.0
  %951 = vmatprep.subr.mxu0 0.0
  %952 = vmatpush1.msra.mxu0 0.0
  %953 = vmatprep.subr.mxu0 0.0
  %954 = vmatpush1.msra.mxu0 0.0
  %955 = vmatprep.mubr.f32.mxu0 0.0
  %956 = vmatmul.mubr.f32.gmra.mrb[0].mxu0 %v796
  %v957 = vpop.f32.mrb[0].mxu0
  %v958 = vadd.f32 %v793, %v957
  %v959 = vpop.f32.mrb[0].mxu0
  %960 = vmatprep.mubr.f32.mxu0 0.0
  %961 = vmatmul.mubr.f32.gmra.mrb[0].mxu0 %v799
  %v962 = vpop.f32.mrb[0].mxu0
  %v963 = vadd.f32 %v793, %v962
  %v964 = vpop.f32.mrb[0].mxu0
  %965 = vmatprep.mubr.f32.mxu0 0.0
  %966 = vmatmul.mubr.f32.gmra.mrb[0].mxu0 %v802
  %v967 = vpop.f32.mrb[0].mxu0
  %v968 = vadd.f32 %v793, %v967
  %v969 = vpop.f32.mrb[0].mxu0
  %970 = vmatprep.mubr.f32.mxu0 0.0
  %971 = vmatmul.mubr.f32.gmra.mrb[0].mxu0 %v805
  %v972 = vpop.f32.mrb[0].mxu0
  %v973 = vadd.f32 %v793, %v972
  %v974 = vpop.f32.mrb[0].mxu0
  %975 = vmatprep.mubr.f32.mxu0 0.0
  %976 = vmatmul.mubr.f32.gmra.mrb[0].mxu0 %v808
  %v977 = vpop.f32.mrb[0].mxu0
  %v978 = vadd.f32 %v793, %v977
  %v979 = vpop.f32.mrb[0].mxu0
  %980 = vmatprep.mubr.f32.mxu0 0.0
  %981 = vmatmul.mubr.f32.gmra.mrb[0].mxu0 %v811
  %v982 = vpop.f32.mrb[0].mxu0
  %v983 = vadd.f32 %v793, %v982
  %v984 = vpop.f32.mrb[0].mxu0
  %985 = vmatprep.mubr.f32.mxu0 0.0
  %986 = vmatmul.mubr.f32.gmra.mrb[0].mxu0 %v814
  %v987 = vpop.f32.mrb[0].mxu0
  %v988 = vadd.f32 %v793, %v987
  %v989 = vpop.f32.mrb[0].mxu0
  %990 = vmatprep.mubr.f32.mxu0 0.0
  %991 = vmatmul.mubr.f32.gmra.mrb[0].mxu0 %v817
  %v992 = vpop.f32.mrb[0].mxu0
  %v993 = vadd.f32 %v793, %v992
  %v994 = vpop.f32.mrb[0].mxu0
  %995 = vmatprep.mubr.f32.mxu0 0.0
  %996 = vmatmul.mubr.f32.gmra.mrb[0].mxu0 %v820
  %v997 = vpop.f32.mrb[0].mxu0
  %v998 = vadd.f32 %v793, %v997
  %v999 = vpop.f32.mrb[0].mxu0
  %1000 = vmatprep.mubr.f32.mxu0 0.0
  %1001 = vmatmul.mubr.f32.gmra.mrb[0].mxu0 %v823
  %v1002 = vpop.f32.mrb[0].mxu0
  %v1003 = vadd.f32 %v793, %v1002
  %v1004 = vpop.f32.mrb[0].mxu0
  %1005 = vmatprep.mubr.f32.mxu0 0.0
  %1006 = vmatmul.mubr.f32.gmra.mrb[0].mxu0 %v826
  %v1007 = vpop.f32.mrb[0].mxu0
  %v1008 = vadd.f32 %v793, %v1007
  %v1009 = vpop.f32.mrb[0].mxu0
  %1010 = vmatprep.mubr.f32.mxu0 0.0
  %1011 = vmatmul.mubr.f32.gmra.mrb[0].mxu0 %v829
  %v1012 = vpop.f32.mrb[0].mxu0
  %v1013 = vadd.f32 %v793, %v1012
  %v1014 = vpop.f32.mrb[0].mxu0
  %1015 = vmatprep.mubr.f32.mxu0 0.0
  %1016 = vmatmul.mubr.f32.gmra.mrb[0].mxu0 %v832
  %v1017 = vpop.f32.mrb[0].mxu0
  %v1018 = vadd.f32 %v793, %v1017
  %v1019 = vpop.f32.mrb[0].mxu0
  %1020 = vmatprep.mubr.f32.mxu0 0.0
  %1021 = vmatmul.mubr.f32.gmra.mrb[0].mxu0 %v835
  %v1022 = vpop.f32.mrb[0].mxu0
  %v1023 = vadd.f32 %v793, %v1022
  %v1024 = vpop.f32.mrb[0].mxu0
  %1025 = vmatprep.mubr.f32.mxu0 0.0
  %1026 = vmatmul.mubr.f32.gmra.mrb[0].mxu0 %v838
  %v1027 = vpop.f32.mrb[0].mxu0
  %v1028 = vadd.f32 %v793, %v1027
  %v1029 = vpop.f32.mrb[0].mxu0
  %1030 = vmatprep.mubr.f32.mxu0 0.0
  %1031 = vmatmul.mubr.f32.gmra.mrb[0].mxu0 %v841
  %v1032 = vpop.f32.mrb[0].mxu0
  %v1033 = vadd.f32 %v793, %v1032
  %v1034 = vpop.f32.mrb[0].mxu0
  %1035 = vmatprep.mubr.f32.mxu0 0.0
  %1036 = vmatmul.mubr.f32.gmra.mrb[0].mxu0 %v844
  %v1037 = vpop.f32.mrb[0].mxu0
  %v1038 = vadd.f32 %v793, %v1037
  %v1039 = vpop.f32.mrb[0].mxu0
  %1040 = vmatprep.mubr.f32.mxu0 0.0
  %1041 = vmatmul.mubr.f32.gmra.mrb[0].mxu0 %v847
  %v1042 = vpop.f32.mrb[0].mxu0
  %v1043 = vadd.f32 %v793, %v1042
  %v1044 = vpop.f32.mrb[0].mxu0
  %1045 = vmatprep.mubr.f32.mxu0 0.0
  %1046 = vmatmul.mubr.f32.gmra.mrb[0].mxu0 %v850
  %v1047 = vpop.f32.mrb[0].mxu0
  %v1048 = vadd.f32 %v793, %v1047
  %v1049 = vpop.f32.mrb[0].mxu0
  %1050 = vmatprep.mubr.f32.mxu0 0.0
  %1051 = vmatmul.mubr.f32.gmra.mrb[0].mxu0 %v853
  %v1052 = vpop.f32.mrb[0].mxu0
  %v1053 = vadd.f32 %v793, %v1052
  %v1054 = vpop.f32.mrb[0].mxu0
  %1055 = vmatprep.mubr.f32.mxu0 0.0
  %1056 = vmatmul.mubr.f32.gmra.mrb[0].mxu0 %v856
  %v1057 = vpop.f32.mrb[0].mxu0
  %v1058 = vadd.f32 %v793, %v1057
  %v1059 = vpop.f32.mrb[0].mxu0
  %1060 = vmatprep.mubr.f32.mxu0 0.0
  %1061 = vmatmul.mubr.f32.gmra.mrb[0].mxu0 %v859
  %v1062 = vpop.f32.mrb[0].mxu0
  %v1063 = vadd.f32 %v793, %v1062
  %v1064 = vpop.f32.mrb[0].mxu0
  %1065 = vmatprep.mubr.f32.mxu0 0.0
  %1066 = vmatmul.mubr.f32.gmra.mrb[0].mxu0 %v862
  %v1067 = vpop.f32.mrb[0].mxu0
  %v1068 = vadd.f32 %v793, %v1067
  %v1069 = vpop.f32.mrb[0].mxu0
  %1070 = vmatprep.mubr.f32.mxu0 0.0
  %1071 = vmatmul.mubr.f32.gmra.mrb[0].mxu0 %v865
  %v1072 = vpop.f32.mrb[0].mxu0
  %v1073 = vadd.f32 %v793, %v1072
  %v1074 = vpop.f32.mrb[0].mxu0
  %1075 = vmatprep.mubr.f32.mxu0 0.0
  %1076 = vmatmul.mubr.f32.gmra.mrb[0].mxu0 %v868
  %v1077 = vpop.f32.mrb[0].mxu0
  %v1078 = vadd.f32 %v793, %v1077
  %v1079 = vpop.f32.mrb[0].mxu0
  %1080 = vmatprep.mubr.f32.mxu0 0.0
  %1081 = vmatmul.mubr.f32.gmra.mrb[0].mxu0 %v871
  %v1082 = vpop.f32.mrb[0].mxu0
  %v1083 = vadd.f32 %v793, %v1082
  %v1084 = vpop.f32.mrb[0].mxu0
  %1085 = vmatprep.mubr.f32.mxu0 0.0
  %1086 = vmatmul.mubr.f32.gmra.mrb[0].mxu0 %v874
  %v1087 = vpop.f32.mrb[0].mxu0
  %v1088 = vadd.f32 %v793, %v1087
  %v1089 = vpop.f32.mrb[0].mxu0
  %1090 = vmatprep.mubr.f32.mxu0 0.0
  %1091 = vmatmul.mubr.f32.gmra.mrb[0].mxu0 %v877
  %v1092 = vpop.f32.mrb[0].mxu0
  %v1093 = vadd.f32 %v793, %v1092
  %v1094 = vpop.f32.mrb[0].mxu0
  %1095 = vmatprep.mubr.f32.mxu0 0.0
  %1096 = vmatmul.mubr.f32.gmra.mrb[0].mxu0 %v880
  %v1097 = vpop.f32.mrb[0].mxu0
  %v1098 = vadd.f32 %v793, %v1097
  %v1099 = vpop.f32.mrb[0].mxu0
  %1100 = vmatprep.mubr.f32.mxu0 0.0
  %1101 = vmatmul.mubr.f32.gmra.mrb[0].mxu0 %v883
  %v1102 = vpop.f32.mrb[0].mxu0
  %v1103 = vadd.f32 %v793, %v1102
  %v1104 = vpop.f32.mrb[0].mxu0
  %1105 = vmatprep.mubr.f32.mxu0 0.0
  %1106 = vmatmul.mubr.f32.gmra.mrb[0].mxu0 %v886
  %v1107 = vpop.f32.mrb[0].mxu0
  %v1108 = vadd.f32 %v793, %v1107
  %v1109 = vpop.f32.mrb[0].mxu0
  %1110 = vmatprep.mubr.f32.mxu0 0.0
  %1111 = vmatmul.mubr.f32.gmra.mrb[0].mxu0 %v889
  %v1112 = vpop.f32.mrb[0].mxu0
  %v1113 = vadd.f32 %v793, %v1112
  %v1114 = vpop.f32.mrb[0].mxu0
  %1115 = vdwg.mxu0
  %1116 = vst [vmem:[%s7] sm:$0xff] %v958
  %1117 = vst [vmem:[%s7 + $0x8] sm:$0xff] %v963
  %1118 = vst [vmem:[%s7 + $0x10] sm:$0xff] %v968
  %1119 = vst [vmem:[%s7 + $0x18] sm:$0xff] %v973
  %1120 = vst [vmem:[%s7 + $0x20] sm:$0xff] %v978
  %1121 = vst [vmem:[%s7 + $0x28] sm:$0xff] %v983
  %1122 = vst [vmem:[%s7 + $0x30] sm:$0xff] %v988
  %1123 = vst [vmem:[%s7 + $0x38] sm:$0xff] %v993
  %1124 = vst [vmem:[%s7 + $0x40] sm:$0xff] %v998
  %1125 = vst [vmem:[%s7 + $0x48] sm:$0xff] %v1003
  %1126 = vst [vmem:[%s7 + $0x50] sm:$0xff] %v1008
  %1127 = vst [vmem:[%s7 + $0x58] sm:$0xff] %v1013
  %1128 = vst [vmem:[%s7 + $0x60] sm:$0xff] %v1018
  %1129 = vst [vmem:[%s7 + $0x68] sm:$0xff] %v1023
  %1130 = vst [vmem:[%s7 + $0x70] sm:$0xff] %v1028
  %1131 = vst [vmem:[%s7 + $0x78] sm:$0xff] %v1033
  %1132 = vst [vmem:[%s7 + $0x80] sm:$0xff] %v1038
  %1133 = vst [vmem:[%s7 + $0x88] sm:$0xff] %v1043
  %1134 = vst [vmem:[%s7 + $0x90] sm:$0xff] %v1048
  %1135 = vst [vmem:[%s7 + $0x98] sm:$0xff] %v1053
  %1136 = vst [vmem:[%s7 + $0xa0] sm:$0xff] %v1058
  %1137 = vst [vmem:[%s7 + $0xa8] sm:$0xff] %v1063
  %1138 = vst [vmem:[%s7 + $0xb0] sm:$0xff] %v1068
  %1139 = vst [vmem:[%s7 + $0xb8] sm:$0xff] %v1073
  %1140 = vst [vmem:[%s7 + $0xc0] sm:$0xff] %v1078
  %1141 = vst [vmem:[%s7 + $0xc8] sm:$0xff] %v1083
  %1142 = vst [vmem:[%s7 + $0xd0] sm:$0xff] %v1088
  %1143 = vst [vmem:[%s7 + $0xd8] sm:$0xff] %v1093
  %1144 = vst [vmem:[%s7 + $0xe0] sm:$0xff] %v1098
  %1145 = vst [vmem:[%s7 + $0xe8] sm:$0xff] %v1103
  %1146 = vst [vmem:[%s7 + $0xf0] sm:$0xff] %v1108
  %1147 = vst [vmem:[%s7 + $0xf8] sm:$0xff] %v1113
  // Predicated region
  $region30: #{mlp_forward.1} parent=0 // pred_check
    _
  $region31: #{mlp_forward.1} parent=0 // pred_check_branch
    %1149 = sbr.rel (0) target = $region33
  $region32: #{mlp_forward.1} parent=0 // pred_region
    _
  $region33: #{mlp_forward.1} parent=0 // pred_fallthru
    _
  // Predicated region
  $region34: #{mlp_forward.1} parent=0 // pred_check
    _
  $region35: #{mlp_forward.1} parent=0 // pred_check_branch
    %1151 = sbr.rel (0) target = $region37
  $region36: #{mlp_forward.1} parent=0 // pred_region
    _
  $region37: #{mlp_forward.1} parent=0 // pred_fallthru
    _

</llo_original>
